<compile_context>
chip_gen: v6e
topology: v6e:2x2x1
jax: 0.10.0
libtpu: 0.0.40
codegen_flags: <defaults>
</compile_context>

<pallas_src>
import numpy as np
import jax
import jax.numpy as jnp
from jax.experimental import pallas as pl
from jax.experimental.pallas import tpu as pltpu

LANE = 128      # vreg lane width (batch axis)
SUBLANE = 8     # vreg sublane height (node axis padding)


# ---------------------------------------------------------------------------
# Kernel factory: topology baked in as compile-time Python constants.
# ---------------------------------------------------------------------------
def make_recnn_kernel(ops, in0, in1):
    """Build a Pallas kernel for one fixed DAG.

    ops[i]  : 0=terminal, 1='+', 2='-'   (topologically ordered)
    in0/in1 : child node indices for op nodes (must precede node i).
    """
    n = len(ops)
    # Host-side validation of the topological write-before-read invariant
    # (replaces the in-kernel hazard the review flagged).
    for i in range(n):
        if ops[i] != 0:
            assert 0 <= in0[i] < i and 0 <= in1[i] < i, (
                f"node {i}: children must precede it in topological order"
            )

    def kernel(params_ref, vals_ref, out_ref):
        # Scalar Linear weights/biases from SMEM (hoisted, read once).
        wt, bt = params_ref[0], params_ref[1]
        wp0, wp1, bp = params_ref[2], params_ref[3], params_ref[4]
        wm0, wm1, bm = params_ref[5], params_ref[6], params_ref[7]

        # All terminal nodes at once: one VPU FMA over the whole (n_pad, B_pad)
        # slab (nn.Linear(1,1) applied elementwise; padding rows are ignored).
        term = vals_ref[...] * wt + bt

        # Serial chain over op nodes only; every step is one (1, B_pad) vector
        # FMA with statically-chosen weights (topology is a Python constant).
        node = {}
        for i in range(n):
            if ops[i] == 0:                               # terminal
                node[i] = term[i:i + 1, :]                # (1, B_pad) row
            elif ops[i] == 1:                             # '+'  : Linear(2,1)
                node[i] = node[in0[i]] * wp0 + node[in1[i]] * wp1 + bp
            else:                                         # '-'  : Linear(2,1)
                node[i] = node[in0[i]] * wm0 + node[in1[i]] * wm1 + bm

        # self.final is nn.Identity -> last node's output unchanged.
        # Lane-dense (1, B_pad) output slab, written exactly once.
        out_ref[...] = node[n - 1]

    return kernel


# ---------------------------------------------------------------------------
# Wrapper: stage batch-on-lanes slab, single pallas_call, slice real batch.
# ---------------------------------------------------------------------------
def recnn_forward(ops, in0, in1, vals, params):
    """Batched RecNN forward.

    ops/in0/in1: Python lists describing the (shared) topologically-ordered DAG.
    vals:        float32[B, n] terminal values per batch element (op-node
                 entries ignored).
    params:      float32[8] packed [Wt, bt, Wp0, Wp1, bp, Wm0, Wm1, bm].
    Returns float32[B, 1]; batch size 1 reproduces the module's single-graph
    forward (output shape (length,) = (1,)).
    """
    B, n = vals.shape
    assert n == len(ops)
    n_pad = max(SUBLANE, -(-n // SUBLANE) * SUBLANE)
    b_pad = max(LANE, -(-B // LANE) * LANE)

    # Batch on the lane axis: (n_pad, B_pad) slab, zero padded.
    vals_slab = jnp.zeros((n_pad, b_pad), jnp.float32).at[:n, :B].set(vals.T)

    kernel = make_recnn_kernel(ops, in0, in1)
    out = pl.pallas_call(
        kernel,
        out_shape=jax.ShapeDtypeStruct((1, b_pad), jnp.float32),
        in_specs=[
            pl.BlockSpec(memory_space=pltpu.MemorySpace.SMEM),   # params (scalars)
            pl.BlockSpec(memory_space=pltpu.MemorySpace.VMEM),   # vals slab
        ],
        out_specs=pl.BlockSpec(memory_space=pltpu.MemorySpace.VMEM),
    )(params, vals_slab)

    return out[0, :B].reshape(B, 1)


# ---------------------------------------------------------------------------
# Host-side glue: PyTorch-style nn.Linear init, reference impl, example DAG.
# TODO(synk): networkx DiGraph / nx.topological_sort has no Pallas equivalent;
#             the topological plan is computed host-side and baked into the
#             kernel at trace time as constant index tables.
# ---------------------------------------------------------------------------
def init_params(key):
    k_terminal, k_plus, k_minus = jax.random.split(key, 3)

    def linear_init(k, out_f, in_f):
        kw, kb = jax.random.split(k)
        bound = 1.0 / np.sqrt(in_f)
        w = jax.random.uniform(kw, (out_f, in_f), jnp.float32, -bound, bound)
        b = jax.random.uniform(kb, (out_f,), jnp.float32, -bound, bound)
        return w, b

    wt, bt = linear_init(k_terminal, 1, 1)   # self.terminal = nn.Linear(1, 1)
    wp, bp = linear_init(k_plus, 1, 2)       # self.plus     = nn.Linear(2, 1)
    wm, bm = linear_init(k_minus, 1, 2)      # self.minus    = nn.Linear(2, 1)
    packed = jnp.concatenate(
        [wt.reshape(-1), bt, wp.reshape(-1), bp, wm.reshape(-1), bm]
    ).astype(jnp.float32)
    return (wt, bt, wp, bp, wm, bm), packed


def reference_forward(ops, in0, in1, vals_np, raw_params):
    wt, bt, wp, bp, wm, bm = [np.asarray(p, dtype=np.float32) for p in raw_params]
    B, n = vals_np.shape
    out = np.zeros((B, 1), dtype=np.float32)
    for b in range(B):
        node = np.zeros(n, dtype=np.float32)
        for i in range(n):
            if ops[i] == 0:      # terminal: Linear(1,1)
                node[i] = vals_np[b, i] * wt[0, 0] + bt[0]
            else:                # '+' / '-': Linear(2,1)
                w, bb = (wp, bp) if ops[i] == 1 else (wm, bm)
                node[i] = node[in0[i]] * w[0, 0] + node[in1[i]] * w[0, 1] + bb[0]
        out[b, 0] = node[n - 1]
    return out


if __name__ == "__main__":
    key = jax.random.PRNGKey(0)
    k_params, k_vals = jax.random.split(key)
    raw_params, packed_params = init_params(k_params)

    # Expression DAG for ((t0 + t1) - (t2 + t3)), nodes in topological order;
    # op-node input order == topological order of children, matching the order
    # PyTorch's loop appends outputs to parent.inputs.
    plan = [
        ("terminal", ()),
        ("terminal", ()),
        ("terminal", ()),
        ("terminal", ()),
        ("+", (0, 1)),
        ("+", (2, 3)),
        ("-", (4, 5)),
    ]
    op_code = {"terminal": 0, "+": 1, "-": 2}
    n = len(plan)
    ops = [op_code[o] for o, _ in plan]
    in0 = [(i[0] if i else 0) for _, i in plan]
    in1 = [(i[1] if i else 0) for _, i in plan]

    # Batch of 8 terminal-value assignments for the same DAG (batch element 0
    # is the canonical (2+3)-(-1.5+4) example); op-node entries are ignored.
    B = 8
    base_vals = np.zeros((n,), dtype=np.float32)
    base_vals[:4] = [2.0, 3.0, -1.5, 4.0]
    rand_vals = jax.random.normal(k_vals, (B, n), dtype=jnp.float32)
    vals = jnp.asarray(base_vals)[None, :] + rand_vals.at[0].set(0.0)

    out = recnn_forward(ops, in0, in1, vals, packed_params)
    out = jax.block_until_ready(out)

    ref = reference_forward(ops, in0, in1, np.asarray(vals), raw_params)
    np.testing.assert_allclose(np.asarray(out), ref, rtol=1e-5, atol=1e-5)
    print("KERNEL_OK")
</pallas_src>

<mosaic_0001>
module attributes {stable_mosaic.version = 11 : i64} {
  func.func @kernel(%arg0: memref<8xf32, #tpu.memory_space<smem>>, %arg1: memref<8x128xf32, #tpu.memory_space<vmem>>, %arg2: memref<1x128xf32, #tpu.memory_space<vmem>>) attributes {dimension_semantics = [], scalar_prefetch = 0 : i64, scratch_operands = 0 : i64, tpu.core_type = #tpu.core_type<tc>} {
    %c0 = arith.constant 0 : index
    %0 = memref.load %arg0[%c0] : memref<8xf32, #tpu.memory_space<smem>>
    %c1 = arith.constant 1 : index
    %1 = memref.load %arg0[%c1] : memref<8xf32, #tpu.memory_space<smem>>
    %c2 = arith.constant 2 : index
    %2 = memref.load %arg0[%c2] : memref<8xf32, #tpu.memory_space<smem>>
    %c3 = arith.constant 3 : index
    %3 = memref.load %arg0[%c3] : memref<8xf32, #tpu.memory_space<smem>>
    %c4 = arith.constant 4 : index
    %4 = memref.load %arg0[%c4] : memref<8xf32, #tpu.memory_space<smem>>
    %c5 = arith.constant 5 : index
    %5 = memref.load %arg0[%c5] : memref<8xf32, #tpu.memory_space<smem>>
    %c6 = arith.constant 6 : index
    %6 = memref.load %arg0[%c6] : memref<8xf32, #tpu.memory_space<smem>>
    %c7 = arith.constant 7 : index
    %7 = memref.load %arg0[%c7] : memref<8xf32, #tpu.memory_space<smem>>
    %c0_0 = arith.constant 0 : index
    %c0_1 = arith.constant 0 : index
    %8 = vector.load %arg1[%c0_0, %c0_1] : memref<8x128xf32, #tpu.memory_space<vmem>>, vector<8x128xf32>
    %9 = vector.broadcast %0 : f32 to vector<8x128xf32>
    %10 = arith.mulf %8, %9 : vector<8x128xf32>
    %11 = vector.broadcast %1 : f32 to vector<8x128xf32>
    %12 = arith.addf %10, %11 : vector<8x128xf32>
    %13 = vector.extract_strided_slice %12 {offsets = [0, 0], sizes = [1, 128], strides = [1, 1]} : vector<8x128xf32> to vector<1x128xf32>
    %14 = vector.extract_strided_slice %12 {offsets = [1, 0], sizes = [1, 128], strides = [1, 1]} : vector<8x128xf32> to vector<1x128xf32>
    %15 = vector.extract_strided_slice %12 {offsets = [2, 0], sizes = [1, 128], strides = [1, 1]} : vector<8x128xf32> to vector<1x128xf32>
    %16 = vector.extract_strided_slice %12 {offsets = [3, 0], sizes = [1, 128], strides = [1, 1]} : vector<8x128xf32> to vector<1x128xf32>
    %17 = vector.broadcast %2 : f32 to vector<1x128xf32>
    %18 = arith.mulf %13, %17 : vector<1x128xf32>
    %19 = vector.broadcast %3 : f32 to vector<1x128xf32>
    %20 = arith.mulf %14, %19 : vector<1x128xf32>
    %21 = arith.addf %18, %20 : vector<1x128xf32>
    %22 = vector.broadcast %4 : f32 to vector<1x128xf32>
    %23 = arith.addf %21, %22 : vector<1x128xf32>
    %24 = vector.broadcast %2 : f32 to vector<1x128xf32>
    %25 = arith.mulf %15, %24 : vector<1x128xf32>
    %26 = vector.broadcast %3 : f32 to vector<1x128xf32>
    %27 = arith.mulf %16, %26 : vector<1x128xf32>
    %28 = arith.addf %25, %27 : vector<1x128xf32>
    %29 = vector.broadcast %4 : f32 to vector<1x128xf32>
    %30 = arith.addf %28, %29 : vector<1x128xf32>
    %31 = vector.broadcast %5 : f32 to vector<1x128xf32>
    %32 = arith.mulf %23, %31 : vector<1x128xf32>
    %33 = vector.broadcast %6 : f32 to vector<1x128xf32>
    %34 = arith.mulf %30, %33 : vector<1x128xf32>
    %35 = arith.addf %32, %34 : vector<1x128xf32>
    %36 = vector.broadcast %7 : f32 to vector<1x128xf32>
    %37 = arith.addf %35, %36 : vector<1x128xf32>
    %c0_2 = arith.constant 0 : index
    %c0_3 = arith.constant 0 : index
    %38 = vector.load %arg2[%c0_2, %c0_3] : memref<1x128xf32, #tpu.memory_space<vmem>>, vector<1x128xf32>
    tpu.vector_store %arg2[%c0_2, %c0_3], %37 {strides = array<i32>} : memref<1x128xf32, #tpu.memory_space<vmem>>, vector<1x128xf32>,
    return
  }
}

</mosaic_0001>

<llo_original>
// kernel: tpu_custom_call.1
$region0: #{tpu_custom_call.1}
  #allocation0 [shape = 'u32[]', space=smem, size = 0x4, offset = 0x4, fixed_abs, tag = 'smem constant byte address 0x4 - core index']
  #allocation1 [shape = 'u32[144,128]{1,0:T(1,128)}', space=vmem, size = 0x12000, scoped, tag = 'internal scratch']
  %s0 = inlined_call_operand.hbm [shape: f32[8], index: 0, kind: input, shape index: {}]
  %s1 = inlined_call_operand.hbm [shape: f32[8,128], index: 1, kind: input, shape index: {}]
  %s2 = inlined_call_operand.hbm [shape: f32[1,128], index: 2, kind: output, shape index: {}]
  %s3 = sld [smem:[#allocation0]]
  $region26: #{tpu_custom_call.1} parent=0
    _
  %s5 = ssub.s32 1, %s3
  %s6 = scalar_select 0, %s5, %s3
  $region1: #{tpu_custom_call.1} parent=0
    #allocation2 [shape = 'u8[512]{0}', space=smem, size = 0x200, scoped, tag = 'input window, operand 0, single buffered']
    #allocation3 [shape = 's32[1]{0}', space=sflag, size = 0x4, scoped, tag = 'scoped memory for tpu_custom_call.1']
    #allocation4 [shape = 's32[1]{0}', space=sflag, size = 0x4, scoped, tag = 'scoped memory for tpu_custom_call.1']
    #allocation5 [shape = 's32[1]{0}', space=sflag, size = 0x4, scoped, tag = 'scoped memory for tpu_custom_call.1']
    #allocation6 [shape = 'u8[4096]{0}', space=vmem, size = 0x1000, scoped, tag = 'input window, operand 1, single buffered']
    #allocation7 [shape = 'u8[512]{0}', space=vmem, size = 0x400, scoped, tag = 'output window, operand 0, single buffered']
    %7 = vsyncpa [#allocation5], 0
    %8 = vsyncpa [#allocation3], 0
    %9 = vsyncpa [#allocation4], 0
    // Predicated region
    $region2: #{tpu_custom_call.1} parent=1 // pred_check
      _
    $region3: #{tpu_custom_call.1} parent=1 // pred_check_branch
      %11 = sbr.rel (0) target = $region5
    $region4: #{tpu_custom_call.1} parent=1 // pred_region
      %s13 = ssub.s32 16, 16
      %14 = vsyncadd [#allocation5], %s13
      %17 = dma.hbm_to_smem %s0, 16, [#allocation2], [#allocation5]
    $region5: #{tpu_custom_call.1} parent=1 // pred_fallthru
      _
    // Predicated region
    $region6: #{tpu_custom_call.1} parent=1 // pred_check
      _
    $region7: #{tpu_custom_call.1} parent=1 // pred_check_branch
      %19 = sbr.rel (0) target = $region9
    $region8: #{tpu_custom_call.1} parent=1 // pred_region
      %s21 = ssub.s32 128, 128
      %22 = vsyncadd [#allocation3], %s21
      %s24 = sshll.u32 [#allocation6], 4
      %s25 = int_to_ptr.vmem [resolvable:$true] %s24
      %27 = dma.hbm_to_vmem [thread:$0]  %s1, 128, %s25, [#allocation3]
    $region9: #{tpu_custom_call.1} parent=1 // pred_fallthru
      _
    // Predicated region
    $region10: #{tpu_custom_call.1} parent=1 // pred_check
      _
    $region11: #{tpu_custom_call.1} parent=1 // pred_check_branch
      %29 = sbr.rel (0) target = $region13
    $region12: #{tpu_custom_call.1} parent=1 // pred_region
      %30 = dma.done [#allocation5], 16
    $region13: #{tpu_custom_call.1} parent=1 // pred_fallthru
      _
    // Predicated region
    $region14: #{tpu_custom_call.1} parent=1 // pred_check
      _
    $region15: #{tpu_custom_call.1} parent=1 // pred_check_branch
      %32 = sbr.rel (0) target = $region17
    $region16: #{tpu_custom_call.1} parent=1 // pred_region
      %33 = dma.done [#allocation3], 128
    $region17: #{tpu_custom_call.1} parent=1 // pred_fallthru
      _
    %34 = sfence
    %s35 = sld [smem:[#allocation2]]
    %s36 = sld [smem:[#allocation2 + $0x1]]
    %s37 = sld [smem:[#allocation2 + $0x2]]
    %s38 = sld [smem:[#allocation2 + $0x3]]
    %s39 = sld [smem:[#allocation2 + $0x4]]
    %s40 = sld [smem:[#allocation2 + $0x5]]
    %s41 = sld [smem:[#allocation2 + $0x6]]
    %s42 = sld [smem:[#allocation2 + $0x7]]
    %v43 = vld [vmem:[#allocation6] sm:$0xff]
    %v44 = vstv %s35
    %v45 = vmul.f32 %v43, %v44
    %v46 = vstv %s36
    %v47 = vadd.f32 %v45, %v46
    %v48 = vstv %s37
    %v49 = vmul.f32 %v47, %v48
    %v50 = vstv %s38
    %v51 = vmul.f32 %v47, %v50
    %v53 = vrot.slane %v51, 1
    %v55 = vadd.f32 %v49, %v53
    %v56 = vstv %s39
    %v57 = vadd.f32 %v55, %v56
    %v58 = vstv %s40
    %v59 = vmul.f32 %v57, %v58
    %v60 = vstv %s41
    %v61 = vmul.f32 %v57, %v60
    %v63 = vrot.slane %v61, 2
    %v65 = vadd.f32 %v59, %v63
    %v66 = vstv %s42
    %v67 = vadd.f32 %v65, %v66
    %68 = vst [vmem:[#allocation7] sm:$0x1] %v67
    // Predicated region
    $region18: #{tpu_custom_call.1} parent=1 // pred_check
      _
    $region19: #{tpu_custom_call.1} parent=1 // pred_check_branch
      %70 = sbr.rel (0) target = $region21
    $region20: #{tpu_custom_call.1} parent=1 // pred_region
      %s72 = ssub.s32 16, 16
      %73 = vsyncadd [#allocation4], %s72
      %s75 = sshll.u32 [#allocation7], 4
      %s76 = int_to_ptr.vmem [resolvable:$true] %s75
      %78 = dma.vmem_to_hbm [thread:$0]  %s76, 16, %s2, [#allocation4]
    $region21: #{tpu_custom_call.1} parent=1 // pred_fallthru
      _
    // Predicated region
    $region22: #{tpu_custom_call.1} parent=1 // pred_check
      _
    $region23: #{tpu_custom_call.1} parent=1 // pred_check_branch
      %80 = sbr.rel (0) target = $region25
    $region24: #{tpu_custom_call.1} parent=1 // pred_region
      %81 = dma.done [#allocation4], 16
    $region25: #{tpu_custom_call.1} parent=1 // pred_fallthru
      _
    %82 = vsyncpa [#allocation3], 1
    %83 = vsyncpa [#allocation4], 1
    %84 = vsyncpa [#allocation5], 1

</llo_original>
